<compile_context>
chip_gen: v5e
topology: v5e:2x2
jax: 0.10.0
libtpu: 0.0.40
codegen_flags: <defaults>
</compile_context>

<pallas_src>
import functools
import math

import jax
import jax.numpy as jnp
from jax import lax
from jax.experimental import pallas as pl
from jax.experimental.pallas import tpu as pltpu

_INV_SQRT2 = 1.0 / math.sqrt(2.0)


def _round_up(x, m):
    return (x + m - 1) // m * m


def _round_down(x, m):
    return max(m, x // m * m)


def _vmem_capacity_bytes():
    try:
        info = pltpu.get_tpu_info()
        cap = getattr(info, "vmem_capacity_bytes", None)
        if cap:
            return int(cap)
    except Exception:
        pass
    return 64 * 1024 * 1024  # conservative (v7x per-TC VMEM)


def _pick_chunk(tm):
    """Sub-chunk size for the dense+GELU+LN transform (bounds fp32 temp / vreg pressure)."""
    if tm <= 256:
        return tm
    if tm % 256 == 0:
        return 256
    if tm % 128 == 0:
        return 128
    return tm


def _lm_head_kernel(x_ref, wd_ref, bd_ref, g_ref, beta_ref, wdec_ref, bdec_ref,
                    out_ref, h_scratch, *, eps, chunk_rows, n_chunks):
    # Compute the prediction-head transform once per row tile (first vocab step only),
    # chunked over rows so the fp32 intermediate stays small.
    @pl.when(pl.program_id(1) == 0)
    def _():
        def transform(xb):
            # dense: x @ Wd^T — contract in_features (dim 1 of x, dim 1 of Wd[out, in]),
            # native-dtype operands, fp32 accumulation on the MXU.
            h = lax.dot_general(xb, wd_ref[...],
                                dimension_numbers=(((1,), (1,)), ((), ())),
                                preferred_element_type=jnp.float32)
            h = h + bd_ref[...].astype(jnp.float32)
            # exact GELU (erf formulation — nn.GELU default)
            h = 0.5 * h * (1.0 + lax.erf(h * _INV_SQRT2))
            # LayerNorm over hidden, fp32 math (matches the fp16-safe LayerNorm subclass).
            # Note: zero-padded rows give var=0 -> c*rsqrt(eps)=0; finite and sliced off.
            mean = jnp.mean(h, axis=-1, keepdims=True)
            c = h - mean
            var = jnp.mean(c * c, axis=-1, keepdims=True)
            h = c * lax.rsqrt(var + eps)
            h = h * g_ref[...].astype(jnp.float32) + beta_ref[...].astype(jnp.float32)
            # cast back to compute dtype, as the torch LayerNorm subclass does
            return h.astype(h_scratch.dtype)

        if n_chunks == 1:
            h_scratch[...] = transform(x_ref[...])
        else:
            def body(c, carry):
                r0 = pl.multiple_of(c * chunk_rows, chunk_rows)
                h_scratch[pl.ds(r0, chunk_rows), :] = transform(
                    x_ref[pl.ds(r0, chunk_rows), :])
                return carry
            lax.fori_loop(0, n_chunks, body, 0, unroll=(n_chunks <= 8))

    # decoder: h @ Wdec^T + b_dec for this vocab tile (contract hidden dims).
    logits = lax.dot_general(h_scratch[...], wdec_ref[...],
                             dimension_numbers=(((1,), (1,)), ((), ())),
                             preferred_element_type=jnp.float32)
    logits = logits + bdec_ref[...].astype(jnp.float32)
    out_ref[...] = logits.astype(out_ref.dtype)


def deberta_lm_prediction_head(hidden_states, dense_w, dense_b, ln_gamma, ln_beta,
                               decoder_w, decoder_b, *, eps=1e-6,
                               row_tile=512, vocab_tile=2048, compute_dtype=None):
    """hidden_states: [..., H]; dense_w: [H, H]; decoder_w: [V, H] (nn.Linear out x in).

    compute_dtype: optional dtype (e.g. jnp.bfloat16) for x / weights / h_scratch;
    matmuls always accumulate in fp32; output is returned in hidden_states.dtype.
    """
    orig_shape = hidden_states.shape
    H = orig_shape[-1]
    V = decoder_w.shape[0]

    out_dtype = hidden_states.dtype
    compute_dtype = jnp.dtype(compute_dtype) if compute_dtype is not None \
        else jnp.dtype(hidden_states.dtype)

    x2d = hidden_states.reshape(-1, H)
    rows = x2d.shape[0]

    if x2d.dtype != compute_dtype:
        x2d = x2d.astype(compute_dtype)
    if dense_w.dtype != compute_dtype:
        dense_w = dense_w.astype(compute_dtype)
    if decoder_w.dtype != compute_dtype:
        decoder_w = decoder_w.astype(compute_dtype)

    act_bytes = compute_dtype.itemsize
    out_bytes = jnp.dtype(out_dtype).itemsize
    sublane = {4: 8, 2: 16, 1: 32}.get(act_bytes, 8)

    row_tile = max(sublane, row_tile // sublane * sublane)
    vocab_tile = max(128, vocab_tile // 128 * 128)

    # --- row tile ---------------------------------------------------------
    rows_r = _round_up(rows, sublane)
    if rows_r <= row_tile:
        if rows_r >= 2 * sublane:
            # Split into >=2 row tiles so the "parallel" row axis can be sharded
            # across both TensorCores on v7x (harmless on single-TC v5e/v6e).
            tm = _round_up((rows_r + 1) // 2, sublane)
        else:
            tm = rows_r
    else:
        tm = row_tile

    # --- vocab tile (lane-dense, multiple of 128) --------------------------
    tv = min(vocab_tile, _round_up(V, 128))

    # --- fit tiles to the chip's actual VMEM -------------------------------
    vmem_cap = _vmem_capacity_bytes()
    budget = int(0.70 * vmem_cap)
    dec_buf = 3 if vmem_cap >= 96 * 1024 * 1024 else 2  # deeper decoder-W pipeline on v5e/v6e

    def footprint(tm_, tv_):
        chunk_ = _pick_chunk(tm_)
        f = 2 * tm_ * H * act_bytes              # x row tile (double-buffered)
        f += H * H * act_bytes                   # dense W (single-buffered, invariant)
        f += 6 * max(H, 128) * 4                 # bias / gamma / beta (small vectors)
        f += dec_buf * tv_ * H * act_bytes       # decoder W tiles
        f += dec_buf * max(tv_, 128) * 4         # decoder bias tiles
        f += 2 * tm_ * tv_ * out_bytes           # output tiles (double-buffered)
        f += tm_ * H * act_bytes                 # h_scratch
        f += chunk_ * H * 4                      # fp32 transform temp (approx.)
        return f

    while footprint(tm, tv) > budget:
        if tv > 256:
            tv = _round_down(tv // 2, 128)
        elif tm > 256:
            tm = _round_down(tm // 2, sublane)
        elif tv > 128:
            tv = 128
        elif tm > sublane:
            tm = _round_down(tm // 2, sublane)
        else:
            break

    n_row_tiles = -(-rows // tm)
    rows_p = n_row_tiles * tm
    n_vocab_tiles = -(-V // tv)
    v_p = n_vocab_tiles * tv
    dec_buf = min(dec_buf, max(2, n_vocab_tiles))
    chunk_rows = _pick_chunk(tm)
    n_chunks = tm // chunk_rows

    # --- padding ------------------------------------------------------------
    if rows_p != rows:
        x2d = jnp.pad(x2d, ((0, rows_p - rows), (0, 0)))
    if v_p != V:
        decoder_w = jnp.pad(decoder_w, ((0, v_p - V), (0, 0)))
        decoder_b = jnp.pad(decoder_b, ((0, v_p - V),))

    b2d = dense_b.reshape(1, H)
    g2d = ln_gamma.reshape(1, H)
    beta2d = ln_beta.reshape(1, H)
    bdec2d = decoder_b.reshape(1, v_p)

    grid = (n_row_tiles, n_vocab_tiles)

    # Honest cost estimate: decoder W (+bias) is re-streamed once per row tile.
    w_bytes = act_bytes
    cost = pl.CostEstimate(
        flops=2 * rows_p * H * H + 2 * rows_p * H * v_p,
        transcendentals=rows_p * H,  # erf
        bytes_accessed=(rows_p * H * act_bytes
                        + rows_p * v_p * out_bytes
                        + (H * H + 3 * H) * w_bytes
                        + n_row_tiles * (v_p * H * w_bytes + v_p * 4)),
    )

    vmem_limit = int(min(vmem_cap, max(footprint(tm, tv) + (8 << 20), 32 << 20)))

    invariant = dict(pipeline_mode=pl.Buffered(1))  # single-buffer grid-invariant operands

    out = pl.pallas_call(
        functools.partial(_lm_head_kernel, eps=eps,
                          chunk_rows=chunk_rows, n_chunks=n_chunks),
        out_shape=jax.ShapeDtypeStruct((rows_p, v_p), out_dtype),
        grid_spec=pltpu.PrefetchScalarGridSpec(
            num_scalar_prefetch=0,
            grid=grid,
            in_specs=[
                pl.BlockSpec((tm, H), lambda i, j: (i, 0)),                 # x row tile
                pl.BlockSpec((H, H), lambda i, j: (0, 0), **invariant),     # dense W (out,in)
                pl.BlockSpec((1, H), lambda i, j: (0, 0), **invariant),     # dense bias
                pl.BlockSpec((1, H), lambda i, j: (0, 0), **invariant),     # LN gamma
                pl.BlockSpec((1, H), lambda i, j: (0, 0), **invariant),     # LN beta
                pl.BlockSpec((tv, H), lambda i, j: (j, 0),
                             pipeline_mode=pl.Buffered(dec_buf)),           # decoder W tile
                pl.BlockSpec((1, tv), lambda i, j: (0, j)),                 # decoder bias tile
            ],
            out_specs=pl.BlockSpec((tm, tv), lambda i, j: (i, j)),
            scratch_shapes=[pltpu.VMEM((tm, H), compute_dtype)],            # transformed h
        ),
        compiler_params=pltpu.CompilerParams(
            dimension_semantics=("parallel", "arbitrary"),
            vmem_limit_bytes=vmem_limit,
        ),
        cost_estimate=cost,
    )(x2d, dense_w, b2d, g2d, beta2d, decoder_w, bdec2d)

    out = out[:rows, :V]
    return out.reshape(*orig_shape[:-1], V)


if __name__ == "__main__":
    # Small shapes consistent with the module: [batch, seq, hidden] -> [batch, seq, vocab]
    batch, seq, hidden, vocab = 2, 8, 32, 64

    key = jax.random.PRNGKey(0)
    k_x, k_w, k_b, k_dw = jax.random.split(key, 4)

    x = jax.random.normal(k_x, (batch, seq, hidden), dtype=jnp.float32)

    bound = 1.0 / math.sqrt(hidden)
    dense_w = jax.random.uniform(k_w, (hidden, hidden), minval=-bound, maxval=bound,
                                 dtype=jnp.float32)
    dense_b = jax.random.uniform(k_b, (hidden,), minval=-bound, maxval=bound,
                                 dtype=jnp.float32)
    ln_gamma = jnp.ones((hidden,), dtype=jnp.float32)
    ln_beta = jnp.zeros((hidden,), dtype=jnp.float32)
    decoder_w = jax.random.uniform(k_dw, (vocab, hidden), minval=-bound, maxval=bound,
                                   dtype=jnp.float32)
    decoder_b = jnp.zeros((vocab,), dtype=jnp.float32)  # module inits decoder bias to zeros

    # Pure-JAX reference of the full LM head.
    h = x @ dense_w.T + dense_b
    h = 0.5 * h * (1.0 + jax.lax.erf(h / math.sqrt(2.0)))
    mu = h.mean(-1, keepdims=True)
    var = ((h - mu) ** 2).mean(-1, keepdims=True)
    h = (h - mu) / jnp.sqrt(var + 1e-6) * ln_gamma + ln_beta
    ref = h @ decoder_w.T + decoder_b

    # fp32 path — strict check.
    out = deberta_lm_prediction_head(x, dense_w, dense_b, ln_gamma, ln_beta,
                                     decoder_w, decoder_b, eps=1e-6)
    jax.block_until_ready(out)
    assert out.shape == (batch, seq, vocab), out.shape
    assert jnp.allclose(out, ref, atol=1e-4, rtol=1e-4), "fp32 mismatch vs reference"

    # bf16 compute path (halves the dominant decoder-W HBM stream) — loose check.
    out_bf16 = deberta_lm_prediction_head(x, dense_w, dense_b, ln_gamma, ln_beta,
                                          decoder_w, decoder_b, eps=1e-6,
                                          compute_dtype=jnp.bfloat16)
    jax.block_until_ready(out_bf16)
    assert out_bf16.shape == (batch, seq, vocab), out_bf16.shape
    assert jnp.allclose(out_bf16, ref, atol=6e-2, rtol=6e-2), "bf16 mismatch vs reference"

    print("KERNEL_OK")
</pallas_src>

<mosaic_0001>
module attributes {stable_mosaic.version = 11 : i64} {
  func.func @_lm_head_kernel(%arg0: i32, %arg1: i32, %arg2: memref<8x32xf32, #tpu.memory_space<vmem>>, %arg3: memref<32x32xf32, #tpu.memory_space<vmem>>, %arg4: memref<1x32xf32, #tpu.memory_space<vmem>>, %arg5: memref<1x32xf32, #tpu.memory_space<vmem>>, %arg6: memref<1x32xf32, #tpu.memory_space<vmem>>, %arg7: memref<128x32xf32, #tpu.memory_space<vmem>>, %arg8: memref<1x128xf32, #tpu.memory_space<vmem>>, %arg9: memref<8x128xf32, #tpu.memory_space<vmem>>, %arg10: memref<8x32xf32, #tpu.memory_space<vmem>>) attributes {dimension_semantics = [#tpu.dimension_semantics<parallel>, #tpu.dimension_semantics<arbitrary>], iteration_bounds = array<i64: 2, 1>, scalar_prefetch = 0 : i64, scratch_operands = 1 : i64, tpu.core_type = #tpu.core_type<tc>, window_params = [{transform_indices = @transform_0, window_bounds = array<i64: 8, 32>}, {pipeline_mode = #tpu.pipeline_mode<synchronous>, transform_indices = @transform_1, window_bounds = array<i64: 32, 32>}, {pipeline_mode = #tpu.pipeline_mode<synchronous>, transform_indices = @transform_2, window_bounds = array<i64: 1, 32>}, {pipeline_mode = #tpu.pipeline_mode<synchronous>, transform_indices = @transform_3, window_bounds = array<i64: 1, 32>}, {pipeline_mode = #tpu.pipeline_mode<synchronous>, transform_indices = @transform_4, window_bounds = array<i64: 1, 32>}, {pipeline_mode = #tpu.pipeline_mode<double_buffered>, transform_indices = @transform_5, window_bounds = array<i64: 128, 32>}, {transform_indices = @transform_6, window_bounds = array<i64: 1, 128>}, {transform_indices = @transform_7, window_bounds = array<i64: 8, 128>}]} {
    %c0_i32 = arith.constant 0 : i32
    %0 = arith.cmpi eq, %arg1, %c0_i32 : i32
    %1 = arith.extui %0 : i1 to i32
    %c0_i32_0 = arith.constant 0 : i32
    %2 = arith.cmpi ne, %1, %c0_i32_0 : i32
    scf.if %2 {
      %c0_8 = arith.constant 0 : index
      %c0_9 = arith.constant 0 : index
      %10 = vector.load %arg2[%c0_8, %c0_9] : memref<8x32xf32, #tpu.memory_space<vmem>>, vector<8x32xf32>
      %c0_10 = arith.constant 0 : index
      %c0_11 = arith.constant 0 : index
      %11 = vector.load %arg3[%c0_10, %c0_11] : memref<32x32xf32, #tpu.memory_space<vmem>>, vector<32x32xf32>
      %cst_12 = arith.constant dense<0.000000e+00> : vector<8x32xf32>
      %12 = tpu.matmul %10, %11, %cst_12 {dimension_numbers = #tpu.dot_dimension_numbers<[1], [1], [0], [0], [0, 0, 1, 0], [], []>} : vector<8x32xf32>, vector<32x32xf32>, vector<8x32xf32> -> vector<8x32xf32>
      %c0_13 = arith.constant 0 : index
      %c0_14 = arith.constant 0 : index
      %13 = vector.load %arg4[%c0_13, %c0_14] : memref<1x32xf32, #tpu.memory_space<vmem>>, vector<1x32xf32>
      %14 = vector.broadcast %13 : vector<1x32xf32> to vector<8x32xf32>
      %15 = arith.addf %12, %14 : vector<8x32xf32>
      %cst_15 = arith.constant 5.000000e-01 : f32
      %16 = vector.broadcast %cst_15 : f32 to vector<8x32xf32>
      %17 = arith.mulf %16, %15 : vector<8x32xf32>
      %cst_16 = arith.constant 0.707106769 : f32
      %18 = vector.broadcast %cst_16 : f32 to vector<8x32xf32>
      %19 = arith.mulf %15, %18 : vector<8x32xf32>
      %20 = math.erf %19 : vector<8x32xf32>
      %cst_17 = arith.constant 1.000000e+00 : f32
      %21 = vector.broadcast %cst_17 : f32 to vector<8x32xf32>
      %22 = arith.addf %21, %20 : vector<8x32xf32>
      %23 = arith.mulf %17, %22 : vector<8x32xf32>
      %cst_18 = arith.constant dense<0.000000e+00> : vector<8xf32>
      %24 = vector.multi_reduction <add>, %23, %cst_18 [1] : vector<8x32xf32> to vector<8xf32>
      %25 = vector.shape_cast %24 : vector<8xf32> to vector<8x1xf32>
      %cst_19 = arith.constant 3.200000e+01 : f32
      %26 = vector.broadcast %cst_19 : f32 to vector<8x1xf32>
      %27 = arith.divf %25, %26 : vector<8x1xf32>
      %28 = vector.broadcast %27 : vector<8x1xf32> to vector<8x32xf32>
      %29 = arith.subf %23, %28 : vector<8x32xf32>
      %30 = arith.mulf %29, %29 : vector<8x32xf32>
      %cst_20 = arith.constant dense<0.000000e+00> : vector<8xf32>
      %31 = vector.multi_reduction <add>, %30, %cst_20 [1] : vector<8x32xf32> to vector<8xf32>
      %32 = vector.shape_cast %31 : vector<8xf32> to vector<8x1xf32>
      %cst_21 = arith.constant 3.200000e+01 : f32
      %33 = vector.broadcast %cst_21 : f32 to vector<8x1xf32>
      %34 = arith.divf %32, %33 : vector<8x1xf32>
      %cst_22 = arith.constant 9.99999997E-7 : f32
      %35 = vector.broadcast %cst_22 : f32 to vector<8x1xf32>
      %36 = arith.addf %34, %35 : vector<8x1xf32>
      %37 = math.rsqrt %36 : vector<8x1xf32>
      %38 = vector.broadcast %37 : vector<8x1xf32> to vector<8x32xf32>
      %39 = arith.mulf %29, %38 : vector<8x32xf32>
      %c0_23 = arith.constant 0 : index
      %c0_24 = arith.constant 0 : index
      %40 = vector.load %arg5[%c0_23, %c0_24] : memref<1x32xf32, #tpu.memory_space<vmem>>, vector<1x32xf32>
      %41 = vector.broadcast %40 : vector<1x32xf32> to vector<8x32xf32>
      %42 = arith.mulf %39, %41 : vector<8x32xf32>
      %c0_25 = arith.constant 0 : index
      %c0_26 = arith.constant 0 : index
      %43 = vector.load %arg6[%c0_25, %c0_26] : memref<1x32xf32, #tpu.memory_space<vmem>>, vector<1x32xf32>
      %44 = vector.broadcast %43 : vector<1x32xf32> to vector<8x32xf32>
      %45 = arith.addf %42, %44 : vector<8x32xf32>
      %c0_27 = arith.constant 0 : index
      %c0_28 = arith.constant 0 : index
      %46 = vector.load %arg10[%c0_27, %c0_28] : memref<8x32xf32, #tpu.memory_space<vmem>>, vector<8x32xf32>
      tpu.vector_store %arg10[%c0_27, %c0_28], %45 {strides = array<i32>} : memref<8x32xf32, #tpu.memory_space<vmem>>, vector<8x32xf32>,
    } else {
    }
    %c0 = arith.constant 0 : index
    %c0_1 = arith.constant 0 : index
    %3 = vector.load %arg10[%c0, %c0_1] : memref<8x32xf32, #tpu.memory_space<vmem>>, vector<8x32xf32>
    %c0_2 = arith.constant 0 : index
    %c0_3 = arith.constant 0 : index
    %4 = vector.load %arg7[%c0_2, %c0_3] : memref<128x32xf32, #tpu.memory_space<vmem>>, vector<128x32xf32>
    %cst = arith.constant dense<0.000000e+00> : vector<8x128xf32>
    %5 = tpu.matmul %3, %4, %cst {dimension_numbers = #tpu.dot_dimension_numbers<[1], [1], [0], [0], [0, 0, 1, 0], [], []>} : vector<8x32xf32>, vector<128x32xf32>, vector<8x128xf32> -> vector<8x128xf32>
    %c0_4 = arith.constant 0 : index
    %c0_5 = arith.constant 0 : index
    %6 = vector.load %arg8[%c0_4, %c0_5] : memref<1x128xf32, #tpu.memory_space<vmem>>, vector<1x128xf32>
    %7 = vector.broadcast %6 : vector<1x128xf32> to vector<8x128xf32>
    %8 = arith.addf %5, %7 : vector<8x128xf32>
    %c0_6 = arith.constant 0 : index
    %c0_7 = arith.constant 0 : index
    %9 = vector.load %arg9[%c0_6, %c0_7] : memref<8x128xf32, #tpu.memory_space<vmem>>, vector<8x128xf32>
    tpu.vector_store %arg9[%c0_6, %c0_7], %8 {strides = array<i32>} : memref<8x128xf32, #tpu.memory_space<vmem>>, vector<8x128xf32>,
    return
  }
  func.func @transform_0(%arg0: i32, %arg1: i32) -> (i32, i32) {
    %c0_i32 = arith.constant 0 : i32
    %c0_i32_0 = arith.constant 0 : i32
    return %arg0, %c0_i32 : i32, i32
  }
  func.func @transform_1(%arg0: i32, %arg1: i32) -> (i32, i32) {
    %c0_i32 = arith.constant 0 : i32
    %c0_i32_0 = arith.constant 0 : i32
    %c0_i32_1 = arith.constant 0 : i32
    return %c0_i32, %c0_i32_0 : i32, i32
  }
  func.func @transform_2(%arg0: i32, %arg1: i32) -> (i32, i32) {
    %c0_i32 = arith.constant 0 : i32
    %c0_i32_0 = arith.constant 0 : i32
    %c0_i32_1 = arith.constant 0 : i32
    return %c0_i32, %c0_i32_0 : i32, i32
  }
  func.func @transform_3(%arg0: i32, %arg1: i32) -> (i32, i32) {
    %c0_i32 = arith.constant 0 : i32
    %c0_i32_0 = arith.constant 0 : i32
    %c0_i32_1 = arith.constant 0 : i32
    return %c0_i32, %c0_i32_0 : i32, i32
  }
  func.func @transform_4(%arg0: i32, %arg1: i32) -> (i32, i32) {
    %c0_i32 = arith.constant 0 : i32
    %c0_i32_0 = arith.constant 0 : i32
    %c0_i32_1 = arith.constant 0 : i32
    return %c0_i32, %c0_i32_0 : i32, i32
  }
  func.func @transform_5(%arg0: i32, %arg1: i32) -> (i32, i32) {
    %c0_i32 = arith.constant 0 : i32
    %c0_i32_0 = arith.constant 0 : i32
    return %arg1, %c0_i32 : i32, i32
  }
  func.func @transform_6(%arg0: i32, %arg1: i32) -> (i32, i32) {
    %c0_i32 = arith.constant 0 : i32
    %c0_i32_0 = arith.constant 0 : i32
    return %c0_i32, %arg1 : i32, i32
  }
  func.func @transform_7(%arg0: i32, %arg1: i32) -> (i32, i32) {
    %c0_i32 = arith.constant 0 : i32
    return %arg0, %arg1 : i32, i32
  }
}

</mosaic_0001>

<llo_original>
// kernel: tpu_custom_call.1
$region0: #{tpu_custom_call.1}
  #allocation0 [shape = 'u32[]', space=smem, size = 0x4, offset = 0x4, fixed_abs, tag = 'smem constant byte address 0x4 - core index']
  #allocation1 [shape = 'u32[72,128]{1,0:T(1,128)}', space=vmem, size = 0x9000, scoped, tag = 'internal scratch']
  #allocation2 [shape = 'f32[8,32]{1,0:T(8,128)}', space=vmem, size = 0x1000, scoped, tag = 'scratch operand']
  %s0 = inlined_call_operand.vmem [shape: f32[16,32], index: 0, kind: input, shape index: {}]
  %s1 = inlined_call_operand.vmem [shape: f32[32,32], index: 1, kind: input, shape index: {}]
  %s2 = inlined_call_operand.vmem [shape: f32[1,32], index: 2, kind: input, shape index: {}]
  %s3 = inlined_call_operand.vmem [shape: f32[1,32], index: 3, kind: input, shape index: {}]
  %s4 = inlined_call_operand.vmem [shape: f32[1,32], index: 4, kind: input, shape index: {}]
  %s5 = inlined_call_operand.vmem [shape: f32[128,32], index: 5, kind: input, shape index: {}]
  %s6 = inlined_call_operand.vmem [shape: f32[1,128], index: 6, kind: input, shape index: {}]
  %s7 = inlined_call_operand.hbm [shape: f32[16,128], index: 7, kind: output, shape index: {}]
  %s8 = sld [smem:[#allocation0]]
  $region65: #{tpu_custom_call.1} parent=0
    _
  %s10 = ssub.s32 1, %s8
  %s11 = scalar_select 0, %s10, %s8
  $region1: #{tpu_custom_call.1} parent=0
    #allocation3 [shape = 'u8[8192]{0}', space=vmem, size = 0x2000, scoped, tag = 'output window, operand 0']
    #allocation4 [shape = 's32[2]{0}', space=sflag, size = 0x8, scoped, tag = 'scoped memory for tpu_custom_call.1']
    %12 = vsyncpa [#allocation4], 0
    %s13 = scalar_lea.sflag [#allocation4], 1
    %14 = vsyncpa %s13, 0
    loop: start=0, step=1, limit=4
    $region2: #{tpu_custom_call.1} parent=1 // loop_pre_header
      _
    $region3: #{tpu_custom_call.1} parent=1 // loop_header
      %s16 = sphi 0, %s20
      %p17 = scmp.ge.s32.totalorder %s16, 4
      %s23 = sphi 0, %s35
      %s24 = sphi 0, %s31
      %s25 = sphi 0, %s23
      %s26 = sphi 0, %s24
      %s27 = sphi 0, %s25
      %s28 = sphi 0, %s26
      %s38 = sphi 0, %s40
      %s41 = sphi 0, %s38
      %s42 = sphi 0, %s41
      %s58 = sphi 0, %s42
      %s62 = sphi 0, %s62
      %s64 = sphi 0, %s62
      %s65 = sphi 0, %s64
      %s79 = sphi 0, %s65
      %s83 = sphi 0, %s83
      %s85 = sphi 0, %s83
      %s86 = sphi 0, %s85
      %s100 = sphi 0, %s86
      %s104 = sphi 0, %s104
      %s106 = sphi 0, %s104
      %s107 = sphi 0, %s106
      %s121 = sphi 0, %s107
      %s125 = sphi 0, %s125
      %s127 = sphi 0, %s125
      %s128 = sphi 0, %s127
      %s142 = sphi 0, %s128
      %s148 = sphi 0, %s150
      %s151 = sphi 0, %s148
      %s152 = sphi 0, %s151
      %s168 = sphi 0, %s152
      %s174 = sphi 0, %s176
      %s177 = sphi 0, %s174
      %s178 = sphi 0, %s177
      %s194 = sphi 0, %s178
      %s202 = sphi 0, %s204
      %s205 = sphi 0, %s202
      %s206 = sphi 0, %s205
      %s222 = sphi 0, %s206
    $region4: #{tpu_custom_call.1} parent=1 // loop_header_branch
      %19 = sbr.rel (%p17) target = $region8
    $region5: #{tpu_custom_call.1} parent=1 // loop_body
      %s21 = ssub.s32 %s16, 1
      %s22 = ssub.s32 %s16, 2
      %s29 = sadd.s32 1, %s24
      %p30 = scmp.ge.s32.totalorder %s29, 1
      %s31 = scalar_select %p30, 0, %s29
      %s32 = sadd.s32 1, %s23
      %s33 = scalar_select %p30, %s32, %s23
      %p34 = scmp.ge.s32.totalorder %s33, 2
      %s35 = scalar_select %p34, 0, %s33
      %s36 = ssub.s32 %s23, %s35
      %p37 = scmp.eq.s32.totalorder %s36, 0
      %s39 = sadd.s32 %s38, 1
      %s40 = scalar_select %p37, %s38, %s39
      %p43 = pneg %p37
      %p44 = scmp.eq.s32.totalorder %s16, 1
      %p45 = por %p43, %p44
      %p46 = scmp.ne.s32.totalorder %s38, %s41
      %p47 = scmp.eq.s32.totalorder %s16, 0
      %p48 = por %p46, %p47
      %p49 = scmp.ne.s32.totalorder %s38, %s41
      %p50 = scmp.eq.s32.totalorder %s21, 1
      %p51 = por %p49, %p50
      %p52 = scmp.ne.s32.totalorder %s41, %s42
      %p53 = scmp.eq.s32.totalorder %s21, 0
      %p54 = por %p52, %p53
      %p55 = scmp.ne.s32.totalorder %s41, %s42
      %p56 = scmp.eq.s32.totalorder %s22, 1
      %p57 = por %p55, %p56
      %p59 = scmp.ne.s32.totalorder %s42, %s58
      %p60 = scmp.eq.s32.totalorder %s22, 0
      %p61 = por %p59, %p60
      %s63 = sadd.s32 %s62, 1
      %p66 = scmp.eq.s32.totalorder %s16, 1
      %p67 = scmp.ne.s32.totalorder %s62, %s64
      %p68 = scmp.eq.s32.totalorder %s16, 0
      %p69 = por %p67, %p68
      %p70 = scmp.ne.s32.totalorder %s62, %s64
      %p71 = scmp.eq.s32.totalorder %s21, 1
      %p72 = por %p70, %p71
      %p73 = scmp.ne.s32.totalorder %s64, %s65
      %p74 = scmp.eq.s32.totalorder %s21, 0
      %p75 = por %p73, %p74
      %p76 = scmp.ne.s32.totalorder %s64, %s65
      %p77 = scmp.eq.s32.totalorder %s22, 1
      %p78 = por %p76, %p77
      %p80 = scmp.ne.s32.totalorder %s65, %s79
      %p81 = scmp.eq.s32.totalorder %s22, 0
      %p82 = por %p80, %p81
      %s84 = sadd.s32 %s83, 1
      %p87 = scmp.eq.s32.totalorder %s16, 1
      %p88 = scmp.ne.s32.totalorder %s83, %s85
      %p89 = scmp.eq.s32.totalorder %s16, 0
      %p90 = por %p88, %p89
      %p91 = scmp.ne.s32.totalorder %s83, %s85
      %p92 = scmp.eq.s32.totalorder %s21, 1
      %p93 = por %p91, %p92
      %p94 = scmp.ne.s32.totalorder %s85, %s86
      %p95 = scmp.eq.s32.totalorder %s21, 0
      %p96 = por %p94, %p95
      %p97 = scmp.ne.s32.totalorder %s85, %s86
      %p98 = scmp.eq.s32.totalorder %s22, 1
      %p99 = por %p97, %p98
      %p101 = scmp.ne.s32.totalorder %s86, %s100
      %p102 = scmp.eq.s32.totalorder %s22, 0
      %p103 = por %p101, %p102
      %s105 = sadd.s32 %s104, 1
      %p108 = scmp.eq.s32.totalorder %s16, 1
      %p109 = scmp.ne.s32.totalorder %s104, %s106
      %p110 = scmp.eq.s32.totalorder %s16, 0
      %p111 = por %p109, %p110
      %p112 = scmp.ne.s32.totalorder %s104, %s106
      %p113 = scmp.eq.s32.totalorder %s21, 1
      %p114 = por %p112, %p113
      %p115 = scmp.ne.s32.totalorder %s106, %s107
      %p116 = scmp.eq.s32.totalorder %s21, 0
      %p117 = por %p115, %p116
      %p118 = scmp.ne.s32.totalorder %s106, %s107
      %p119 = scmp.eq.s32.totalorder %s22, 1
      %p120 = por %p118, %p119
      %p122 = scmp.ne.s32.totalorder %s107, %s121
      %p123 = scmp.eq.s32.totalorder %s22, 0
      %p124 = por %p122, %p123
      %s126 = sadd.s32 %s125, 1
      %p129 = scmp.eq.s32.totalorder %s16, 1
      %p130 = scmp.ne.s32.totalorder %s125, %s127
      %p131 = scmp.eq.s32.totalorder %s16, 0
      %p132 = por %p130, %p131
      %p133 = scmp.ne.s32.totalorder %s125, %s127
      %p134 = scmp.eq.s32.totalorder %s21, 1
      %p135 = por %p133, %p134
      %p136 = scmp.ne.s32.totalorder %s127, %s128
      %p137 = scmp.eq.s32.totalorder %s21, 0
      %p138 = por %p136, %p137
      %p139 = scmp.ne.s32.totalorder %s127, %s128
      %p140 = scmp.eq.s32.totalorder %s22, 1
      %p141 = por %p139, %p140
      %p143 = scmp.ne.s32.totalorder %s128, %s142
      %p144 = scmp.eq.s32.totalorder %s22, 0
      %p145 = por %p143, %p144
      %s146 = ssub.s32 %s24, %s31
      %p147 = scmp.eq.s32.totalorder %s146, 0
      %s149 = sadd.s32 %s148, 1
      %s150 = scalar_select %p147, %s148, %s149
      %p153 = pneg %p147
      %p154 = scmp.eq.s32.totalorder %s16, 1
      %p155 = por %p153, %p154
      %p156 = scmp.ne.s32.totalorder %s148, %s151
      %p157 = scmp.eq.s32.totalorder %s16, 0
      %p158 = por %p156, %p157
      %p159 = scmp.ne.s32.totalorder %s148, %s151
      %p160 = scmp.eq.s32.totalorder %s21, 1
      %p161 = por %p159, %p160
      %p162 = scmp.ne.s32.totalorder %s151, %s152
      %p163 = scmp.eq.s32.totalorder %s21, 0
      %p164 = por %p162, %p163
      %p165 = scmp.ne.s32.totalorder %s151, %s152
      %p166 = scmp.eq.s32.totalorder %s22, 1
      %p167 = por %p165, %p166
      %p169 = scmp.ne.s32.totalorder %s152, %s168
      %p170 = scmp.eq.s32.totalorder %s22, 0
      %p171 = por %p169, %p170
      %s172 = ssub.s32 %s24, %s31
      %p173 = scmp.eq.s32.totalorder %s172, 0
      %s175 = sadd.s32 %s174, 1
      %s176 = scalar_select %p173, %s174, %s175
      %p179 = pneg %p173
      %p180 = scmp.eq.s32.totalorder %s16, 1
      %p181 = por %p179, %p180
      %p182 = scmp.ne.s32.totalorder %s174, %s177
      %p183 = scmp.eq.s32.totalorder %s16, 0
      %p184 = por %p182, %p183
      %p185 = scmp.ne.s32.totalorder %s174, %s177
      %p186 = scmp.eq.s32.totalorder %s21, 1
      %p187 = por %p185, %p186
      %p188 = scmp.ne.s32.totalorder %s177, %s178
      %p189 = scmp.eq.s32.totalorder %s21, 0
      %p190 = por %p188, %p189
      %p191 = scmp.ne.s32.totalorder %s177, %s178
      %p192 = scmp.eq.s32.totalorder %s22, 1
      %p193 = por %p191, %p192
      %p195 = scmp.ne.s32.totalorder %s178, %s194
      %p196 = scmp.eq.s32.totalorder %s22, 0
      %p197 = por %p195, %p196
      %s198 = ssub.s32 %s23, %s35
      %s199 = ssub.s32 %s24, %s31
      %s200 = sor.u32 %s198, %s199
      %p201 = scmp.eq.s32.totalorder %s200, 0
      %s203 = sadd.s32 %s202, 1
      %s204 = scalar_select %p201, %s202, %s203
      %p207 = pneg %p201
      %p208 = scmp.eq.s32.totalorder %s16, 1
      %p209 = por %p207, %p208
      %p210 = scmp.ne.s32.totalorder %s202, %s205
      %p211 = scmp.eq.s32.totalorder %s16, 0
      %p212 = por %p210, %p211
      %p213 = scmp.ne.s32.totalorder %s202, %s205
      %p214 = scmp.eq.s32.totalorder %s21, 1
      %p215 = por %p213, %p214
      %p216 = scmp.ne.s32.totalorder %s205, %s206
      %p217 = scmp.eq.s32.totalorder %s21, 0
      %p218 = por %p216, %p217
      %p219 = scmp.ne.s32.totalorder %s205, %s206
      %p220 = scmp.eq.s32.totalorder %s22, 1
      %p221 = por %p219, %p220
      %p223 = scmp.ne.s32.totalorder %s206, %s222
      %p224 = scmp.eq.s32.totalorder %s22, 0
      %p225 = por %p223, %p224
      %p226 = scmp.le.s32.totalorder 1, %s16
      %p227 = scmp.lt.s32.totalorder %s16, 3
      %p228 = pnand %p226, %p227
      %p229 = pneg %p228
      // Predicated region
      $region9: #{tpu_custom_call.1} parent=5 // pred_check
        _
      $region10: #{tpu_custom_call.1} parent=5 // pred_check_branch
        %231 = sbr.rel (%p228) target = $region12
      $region11: #{tpu_custom_call.1} parent=5 // pred_region
        %s232 = ssub.s32 %s16, 1
        // Predicated region
        $region13: #{tpu_custom_call.1} parent=11 // pred_check
          %p233 = pneg %p75
        $region14: #{tpu_custom_call.1} parent=11 // pred_check_branch
          %235 = sbr.rel (%p233) target = $region16
        $region15: #{tpu_custom_call.1} parent=11 // pred_region
          _
        $region16: #{tpu_custom_call.1} parent=11 // pred_fallthru
          _
        // Predicated region
        $region17: #{tpu_custom_call.1} parent=11 // pred_check
          %p236 = pneg %p96
        $region18: #{tpu_custom_call.1} parent=11 // pred_check_branch
          %238 = sbr.rel (%p236) target = $region20
        $region19: #{tpu_custom_call.1} parent=11 // pred_region
          _
        $region20: #{tpu_custom_call.1} parent=11 // pred_fallthru
          _
        // Predicated region
        $region21: #{tpu_custom_call.1} parent=11 // pred_check
          %p239 = pneg %p117
        $region22: #{tpu_custom_call.1} parent=11 // pred_check_branch
          %241 = sbr.rel (%p239) target = $region24
        $region23: #{tpu_custom_call.1} parent=11 // pred_region
          _
        $region24: #{tpu_custom_call.1} parent=11 // pred_fallthru
          _
        // Predicated region
        $region25: #{tpu_custom_call.1} parent=11 // pred_check
          %p242 = pneg %p138
        $region26: #{tpu_custom_call.1} parent=11 // pred_check_branch
          %244 = sbr.rel (%p242) target = $region28
        $region27: #{tpu_custom_call.1} parent=11 // pred_region
          _
        $region28: #{tpu_custom_call.1} parent=11 // pred_fallthru
          _
        // Predicated region
        $region29: #{tpu_custom_call.1} parent=11 // pred_check
          %p245 = pneg %p164
        $region30: #{tpu_custom_call.1} parent=11 // pred_check_branch
          %247 = sbr.rel (%p245) target = $region32
        $region31: #{tpu_custom_call.1} parent=11 // pred_region
          %s248 = smul.u32 16, %s26
          %p249 = scmp.lt.s32.totalorder %s248, 15
          %s250 = scalar_select %p249, %s248, 15
          %s251 = smul.addr %s250, 8
          %s252 = scalar_lea.vmem %s5, %s251
          %s253 = smul.u32 16, %s26
        $region32: #{tpu_custom_call.1} parent=11 // pred_fallthru
          _
        // Predicated region
        $region33: #{tpu_custom_call.1} parent=11 // pred_check
          %p254 = pneg %p190
        $region34: #{tpu_custom_call.1} parent=11 // pred_check_branch
          %256 = sbr.rel (%p254) target = $region36
        $region35: #{tpu_custom_call.1} parent=11 // pred_region
          %p257 = scmp.lt.s32.totalorder %s26, 0
          %s258 = scalar_select %p257, %s26, 0
          %s259 = scalar_lea.vmem %s6, %s258
        $region36: #{tpu_custom_call.1} parent=11 // pred_fallthru
          _
      $region12: #{tpu_custom_call.1} parent=5 // pred_fallthru
        _
      %p260 = scmp.lt.s32.totalorder %s16, 2
      // Predicated region
      $region37: #{tpu_custom_call.1} parent=5 // pred_check
        %p261 = pneg %p260
      $region38: #{tpu_custom_call.1} parent=5 // pred_check_branch
        %263 = sbr.rel (%p261) target = $region40
      $region39: #{tpu_custom_call.1} parent=5 // pred_region
        // Predicated region
        $region41: #{tpu_custom_call.1} parent=39 // pred_check
          %p264 = pneg %p48
        $region42: #{tpu_custom_call.1} parent=39 // pred_check_branch
          %266 = sbr.rel (%p264) target = $region44
        $region43: #{tpu_custom_call.1} parent=39 // pred_region
          %p267 = scmp.lt.s32.totalorder %s23, 1
          %s268 = scalar_select %p267, %s23, 1
          %s269 = smul.addr %s268, 8
          %s270 = scalar_lea.vmem %s0, %s269
        $region44: #{tpu_custom_call.1} parent=39 // pred_fallthru
          _
      $region40: #{tpu_custom_call.1} parent=5 // pred_fallthru
        _
      %p271 = scmp.le.s32.totalorder 1, %s16
      %p272 = scmp.lt.s32.totalorder %s16, 3
      %p273 = pnand %p271, %p272
      %p274 = pneg %p273
      // Predicated region
      $region45: #{tpu_custom_call.1} parent=5 // pred_check
        _
      $region46: #{tpu_custom_call.1} parent=5 // pred_check_branch
        %276 = sbr.rel (%p273) target = $region48
      $region47: #{tpu_custom_call.1} parent=5 // pred_region
        %s277 = ssub.s32 %s16, 1
        %p278 = scmp.lt.s32.totalorder %s25, 1
        %s279 = scalar_select %p278, %s25, 1
        %s280 = smul.addr %s279, 8
        %s281 = scalar_lea.vmem %s0, %s280
        %p282 = pneg %p54
        %p283 = pneg %p51
        %p284 = pneg %p75
        %p285 = pneg %p72
        %p286 = pneg %p96
        %p287 = pneg %p93
        %p288 = pneg %p117
        %p289 = pneg %p114
        %p290 = pneg %p138
        %p291 = pneg %p135
        %s292 = smul.u32 16, %s26
        %p293 = scmp.lt.s32.totalorder %s292, 15
        %s294 = scalar_select %p293, %s292, 15
        %s295 = smul.addr %s294, 8
        %s296 = scalar_lea.vmem %s5, %s295
        %p297 = pneg %p164
        %p298 = pneg %p161
        %p299 = scmp.lt.s32.totalorder %s26, 0
        %s300 = scalar_select %p299, %s26, 0
        %s301 = scalar_lea.vmem %s6, %s300
        %p302 = pneg %p190
        %p303 = pneg %p187
        %p304 = pneg %p218
        %p305 = pneg %p215
        %s306 = sand.u32 %s205, 1
        %s307 = scalar_lea.sflag [#allocation4], %s306
        %s308 = sand.u32 %s205, 1
        %s309 = smul.addr %s308, 8
        %s310 = scalar_lea.vmem [#allocation3], %s309
        %p311 = scmp.lt.s32.totalorder %s25, 1
        %s312 = scalar_select %p311, %s25, 1
        %s313 = smul.addr %s312, 8
        %s314 = scalar_lea.vmem %s0, %s313
        %s315 = smul.u32 16, %s26
        %p316 = scmp.lt.s32.totalorder %s315, 15
        %s317 = scalar_select %p316, %s315, 15
        %s318 = smul.addr %s317, 8
        %s319 = scalar_lea.vmem %s5, %s318
        %s320 = smul.u32 16, %s26
        %p321 = scmp.lt.s32.totalorder %s26, 0
        %s322 = scalar_select %p321, %s26, 0
        %s323 = scalar_lea.vmem %s6, %s322
        %p324 = scmp.eq.s32.totalorder %s26, 0
        // Predicated region
        $region49: #{tpu_custom_call.1} parent=47 // pred_check
          %p325 = pneg %p324
        $region50: #{tpu_custom_call.1} parent=47 // pred_check_branch
          %327 = sbr.rel (%p325) target = $region52
        $region51: #{tpu_custom_call.1} parent=47 // pred_region
          %v328 = vld [vmem:[%s314] sm:$0xff]
          %v329 = vld [vmem:[%s1] sm:$0xff]
          %v330 = vld [vmem:[%s1 + $0x8] sm:$0xff]
          %v331 = vld [vmem:[%s1 + $0x10] sm:$0xff]
          %v332 = vld [vmem:[%s1 + $0x18] sm:$0xff]
          %v333 = vld [vmem:[%s2] sm:$0x1]
          %v335 = vperm.slane %v333, 0
          %vm337 = vcmask 261120
          %v339 = vsel %vm337, %v328, 0
          %v342 = vsel %vm337, %v329, 0
          %v345 = vsel %vm337, %v330, 0
          %v348 = vsel %vm337, %v331, 0
          %v351 = vsel %vm337, %v332, 0
          %353 = vmatpush.xpose.msra.mxu0 0.0
          %354 = vmatpush.xpose.msra.mxu0 0.0
          %355 = vmatpush.xpose.msra.mxu0 0.0
          %356 = vmatpush.xpose.msra.mxu0 0.0
          %357 = vmatpush.xpose.msra.mxu0 0.0
          %358 = vmatpush.xpose.msra.mxu0 0.0
          %359 = vmatpush.xpose.msra.mxu0 0.0
          %360 = vmatpush.xpose.msra.mxu0 0.0
          %361 = vmatpush.xpose.msra.mxu0 0.0
          %362 = vmatpush.xpose.msra.mxu0 0.0
          %363 = vmatpush.xpose.msra.mxu0 0.0
          %364 = vmatpush.xpose.msra.mxu0 0.0
          %365 = vmatpush.xpose.msra.mxu0 %v351
          %366 = vmatpush.xpose.msra.mxu0 %v348
          %367 = vmatpush.xpose.msra.mxu0 %v345
          %368 = vmatpush.xpose.msra.mxu0 %v342
          %369 = vmatmul.f32.gmra.mxu0 %v339
          %v370 = vpop.f32.mrf.mxu0
          %v371 = vadd.f32 %v335, %v370
          %372 = vdwg.mxu0
          %v373 = vmul.f32 %v371, 0.5
          %v374 = vmul.f32 %v371, 0.70710677
          %v375 = vmul.f32 %v374, %v374
          %v376 = vmin.f32 16.0, %v375
          %v377 = vmul.f32 %v376, 2.1237322e-06
          %v378 = vadd.f32 %v377, 0.00028619796
          %v379 = vmul.f32 %v376, %v378
          %v380 = vadd.f32 %v379, 0.0036580483
          %v381 = vmul.f32 %v376, %v380
          %v382 = vadd.f32 %v381, 0.05243302
          %v383 = vmul.f32 %v376, %v382
          %v384 = vadd.f32 %v383, 0.18741608
          %v385 = vmul.f32 %v376, %v384
          %v386 = vadd.f32 %v385, 1.1283791
          %v387 = vmul.f32 %v374, %v386
          %v388 = vmul.f32 %v376, 3.8918573e-05
          %v389 = vadd.f32 %v388, 0.001143296
          %v390 = vmul.f32 %v376, %v389
          %v391 = vadd.f32 %v390, 0.014752088
          %v392 = vmul.f32 %v376, %v391
          %v393 = vadd.f32 %v392, 0.112945676
          %v394 = vmul.f32 %v376, %v393
          %v395 = vadd.f32 %v394, 0.4994258
          %v396 = vmul.f32 %v376, %v395
          %v397 = vadd.f32 %v396, 1.0
          %v398 = vrcp.pop %v397
          %v399 = vmul.f32 %v397, %v398
          %v400 = vsub.f32 1.0, %v399
          %v401 = vmul.f32 %v398, %v400
          %v402 = vadd.f32 %v398, %v401
          %vm403 = vweird.f32 %v397
          %vm404 = vweird.f32 %v398
          %vm405 = vmor %vm403, %vm404
          %v406 = vsel %vm405, %v398, %v402
          %v407 = vand.u32 2147483647, %v397
          %vm408 = vcmp.eq.f32.partialorder %v407, 8.507059e+37
          %v409 = vand.u32 %v397, 2147483648
          %v410 = vor.u32 1.1754944e-38, %v409
          %v411 = vsel %vm408, %v410, %v406
          %v412 = vmul.f32 %v387, %v411
          %v413 = vmin.f32 %v412, 1.0
          %v414 = vmax.f32 %v413, -1.0
          %v415 = vadd.f32 %v414, 1.0
          %v416 = vmul.f32 %v373, %v415
          %v417 = vsel %vm337, %v416, 0.0
          %418 = vadd.xlane.f32.xlu0 %v417
          %v419 = vpop.xlane.xlu0 %418
          %v420 = vrcp.pop 32.0
          %v421 = vmul.f32 32.0, %v420
          %v422 = vsub.f32 1.0, %v421
          %v423 = vmul.f32 %v420, %v422
          %v424 = vadd.f32 %v420, %v423
          %vm425 = vweird.f32 %v420
          %v426 = vsel %vm425, %v420, %v424
          %v427 = vmul.f32 %v419, %v426
          %v428 = vsub.f32 %v416, %v427
          %v429 = vmul.f32 %v428, %v428
          %v430 = vsel %vm337, %v429, 0.0
          %431 = vadd.xlane.f32.xlu0 %v430
          %v432 = vpop.xlane.xlu0 %431
          %v433 = vmul.f32 %v432, %v426
          %v434 = vadd.f32 %v433, 1e-06
          %v435 = vrsqrt.pop %v434
          %v436 = vmul.f32 %v435, %v434
          %v437 = vmul.f32 %v436, %v435
          %v438 = vmul.f32 0.5, %v437
          %v439 = vsub.f32 1.5, %v438
          %v440 = vmul.f32 %v435, %v439
          %vm441 = vweird.f32 %v434
          %vm442 = vweird.f32 %v435
          %vm443 = vmor %vm441, %vm442
          %v444 = vsel %vm443, %v435, %v440
          %v445 = vmul.f32 %v428, %v444
          %v446 = vld [vmem:[%s3] sm:$0x1]
          %v448 = vperm.slane %v446, 0
          %v450 = vmul.f32 %v445, %v448
          %v451 = vld [vmem:[%s4] sm:$0x1]
          %v453 = vperm.slane %v451, 0
          %v455 = vadd.f32 %v450, %v453
          %456 = vst.msk [vmem:[#allocation2] sm:$0xff] %vm337, %v455
        $region52: #{tpu_custom_call.1} parent=47 // pred_fallthru
          _
        %v457 = vld [vmem:[#allocation2] sm:$0xff]
        %v458 = vld [vmem:[%s319] sm:$0xff]
        %v459 = vld [vmem:[%s319 + $0x8] sm:$0xff]
        %v460 = vld [vmem:[%s319 + $0x10] sm:$0xff]
        %v461 = vld [vmem:[%s319 + $0x18] sm:$0xff]
        %v462 = vld [vmem:[%s319 + $0x20] sm:$0xff]
        %v463 = vld [vmem:[%s319 + $0x28] sm:$0xff]
        %v464 = vld [vmem:[%s319 + $0x30] sm:$0xff]
        %v465 = vld [vmem:[%s319 + $0x38] sm:$0xff]
        %v466 = vld [vmem:[%s319 + $0x40] sm:$0xff]
        %v467 = vld [vmem:[%s319 + $0x48] sm:$0xff]
        %v468 = vld [vmem:[%s319 + $0x50] sm:$0xff]
        %v469 = vld [vmem:[%s319 + $0x58] sm:$0xff]
        %v470 = vld [vmem:[%s319 + $0x60] sm:$0xff]
        %v471 = vld [vmem:[%s319 + $0x68] sm:$0xff]
        %v472 = vld [vmem:[%s319 + $0x70] sm:$0xff]
        %v473 = vld [vmem:[%s319 + $0x78] sm:$0xff]
        %v474 = vld [vmem:[%s323] sm:$0x1]
        %v476 = vperm.slane %v474, 0
        %vm478 = vcmask 261120
        %v480 = vsel %vm478, %v457, 0
        %v483 = vsel %vm478, %v458, 0
        %v486 = vsel %vm478, %v459, 0
        %v489 = vsel %vm478, %v460, 0
        %v492 = vsel %vm478, %v461, 0
        %v495 = vsel %vm478, %v462, 0
        %v498 = vsel %vm478, %v463, 0
        %v501 = vsel %vm478, %v464, 0
        %v504 = vsel %vm478, %v465, 0
        %v507 = vsel %vm478, %v466, 0
        %v510 = vsel %vm478, %v467, 0
        %v513 = vsel %vm478, %v468, 0
        %v516 = vsel %vm478, %v469, 0
        %v519 = vsel %vm478, %v470, 0
        %v522 = vsel %vm478, %v471, 0
        %v525 = vsel %vm478, %v472, 0
        %v528 = vsel %vm478, %v473, 0
        %530 = vmatpush.xpose.msra.mxu0 %v528
        %531 = vmatpush.xpose.msra.mxu0 %v525
        %532 = vmatpush.xpose.msra.mxu0 %v522
        %533 = vmatpush.xpose.msra.mxu0 %v519
        %534 = vmatpush.xpose.msra.mxu0 %v516
        %535 = vmatpush.xpose.msra.mxu0 %v513
        %536 = vmatpush.xpose.msra.mxu0 %v510
        %537 = vmatpush.xpose.msra.mxu0 %v507
        %538 = vmatpush.xpose.msra.mxu0 %v504
        %539 = vmatpush.xpose.msra.mxu0 %v501
        %540 = vmatpush.xpose.msra.mxu0 %v498
        %541 = vmatpush.xpose.msra.mxu0 %v495
        %542 = vmatpush.xpose.msra.mxu0 %v492
        %543 = vmatpush.xpose.msra.mxu0 %v489
        %544 = vmatpush.xpose.msra.mxu0 %v486
        %545 = vmatpush.xpose.msra.mxu0 %v483
        %546 = vmatmul.f32.gmra.mxu0 %v480
        %v547 = vpop.f32.mrf.mxu0
        %v548 = vadd.f32 %v476, %v547
        %549 = vdwg.mxu0
        %550 = vst [vmem:[%s310] sm:$0xff] %v548
        %s551 = sand.u32 %s205, 1
        %s552 = scalar_lea.sflag [#allocation4], %s551
        %s553 = sand.u32 %s205, 1
        %s554 = smul.addr %s553, 8
        %s555 = scalar_lea.vmem [#allocation3], %s554
        // Predicated region
        $region53: #{tpu_custom_call.1} parent=47 // pred_check
          %p556 = pneg %p215
        $region54: #{tpu_custom_call.1} parent=47 // pred_check_branch
          %558 = sbr.rel (%p556) target = $region56
        $region55: #{tpu_custom_call.1} parent=47 // pred_region
          %560 = vsyncadd %s552, 0
          %s561 = sadd.s32 %s26, %s25
          %s562 = smul.addr %s561, 8
          %s563 = scalar_lea.hbm %s7, %s562
          %s565 = sshll.u32 %s555, 4
          %s566 = int_to_ptr.vmem [resolvable:$true] %s565
          %s567 = sshll.u32 %s563, 4
          %s568 = int_to_ptr.hbm [resolvable:$true] %s567
          %570 = dma.vmem_to_hbm [thread:$0]  %s566, 128, %s568, %s552
        $region56: #{tpu_custom_call.1} parent=47 // pred_fallthru
          _
      $region48: #{tpu_custom_call.1} parent=5 // pred_fallthru
        _
      %p571 = scmp.le.s32.totalorder 2, %s16
      // Predicated region
      $region57: #{tpu_custom_call.1} parent=5 // pred_check
        %p572 = pneg %p571
      $region58: #{tpu_custom_call.1} parent=5 // pred_check_branch
        %574 = sbr.rel (%p572) target = $region60
      $region59: #{tpu_custom_call.1} parent=5 // pred_region
        %s575 = ssub.s32 %s16, 2
        // Predicated region
        $region61: #{tpu_custom_call.1} parent=59 // pred_check
          %p576 = pneg %p221
        $region62: #{tpu_custom_call.1} parent=59 // pred_check_branch
          %578 = sbr.rel (%p576) target = $region64
        $region63: #{tpu_custom_call.1} parent=59 // pred_region
          %s579 = sand.u32 %s206, 1
          %s580 = scalar_lea.sflag [#allocation4], %s579
          %s581 = sand.u32 %s206, 1
          %s582 = smul.addr %s581, 8
          %s583 = scalar_lea.vmem [#allocation3], %s582
          %585 = dma.done %s580, 128
        $region64: #{tpu_custom_call.1} parent=59 // pred_fallthru
          _
      $region60: #{tpu_custom_call.1} parent=5 // pred_fallthru
        _
    $region6: #{tpu_custom_call.1} parent=1 // loop_footer
      %s20 = sadd.s32 1, %s16
    $region7: #{tpu_custom_call.1} parent=1 // loop_footer_branch
      %15 = sbr.rel target = $region3
    $region8: #{tpu_custom_call.1} parent=1 // loop_exit
      _
    %586 = vsyncpa [#allocation4], 1
    %s587 = scalar_lea.sflag [#allocation4], 1
    %588 = vsyncpa %s587, 1

</llo_original>
